<compile_context>
chip_gen: v7x
topology: tpu7x:2x2x1
jax: 0.10.0
libtpu: 0.0.40
codegen_flags: <defaults>
</compile_context>

<pallas_src>
import jax
import jax.numpy as jnp
from jax import lax
from jax.experimental import pallas as pl
from jax.experimental.pallas import tpu as pltpu

NUM_GROUPS = 4
FEAT = 128
RATIO = 16
HIDDEN = FEAT // RATIO          # 8
WIDTH = NUM_GROUPS * FEAT       # 512
B_TILE_MAX = 1024               # ~2 MiB/tile f32; in+out double-buffered ~8 MiB


def _round_up(n, m):
    return ((n + m - 1) // m) * m


def channel_attention_kernel(x_ref, w1t_ref, b1_ref, w2_ref, b2_ref, o_ref):
    # x_ref / o_ref: (B_TILE, NUM_GROUPS * FEAT)
    x = x_ref[...]
    xf = x.astype(jnp.float32)

    # Global average pooling over the groups: unrolled VPU sum of 128-aligned
    # lane slices (stays off the XLU).
    gap = xf[:, 0:FEAT]
    for g in range(1, NUM_GROUPS):
        gap = gap + xf[:, g * FEAT:(g + 1) * FEAT]
    gap = gap * jnp.float32(1.0 / NUM_GROUPS)               # (B_TILE, 128)

    # fc1 + ReLU  — lane-dense weight (HIDDEN, FEAT), contract last dims (NT).
    h = lax.dot_general(gap, w1t_ref[...],
                        (((1,), (1,)), ((), ())),
                        preferred_element_type=jnp.float32)
    h = jnp.maximum(h + b1_ref[...], 0.0)                    # (B_TILE, HIDDEN)

    # fc2 + Sigmoid
    logits = jnp.dot(h, w2_ref[...],
                     preferred_element_type=jnp.float32) + b2_ref[...]
    weights = jax.nn.sigmoid(logits)                         # (B_TILE, 128)

    # Broadcast-multiply each group slice; full-width 128-lane aligned stores.
    for g in range(NUM_GROUPS):
        sl = slice(g * FEAT, (g + 1) * FEAT)
        o_ref[:, sl] = (xf[:, sl] * weights).astype(o_ref.dtype)


def channel_attention(x, w1, b1, w2, b2, num_groups=NUM_GROUPS,
                      b_tile_max=B_TILE_MAX):
    """x: (batch, num_groups*128); w1: (128, 8); b1: (1, 8); w2: (8, 128); b2: (1, 128)."""
    batch, width = x.shape
    assert width == num_groups * FEAT

    # Batch tile: multiple of 8 (sublane), capped for VMEM; pad batch to a
    # multiple of the tile so every grid step writes a full block.
    b_tile = min(b_tile_max, _round_up(batch, 8))
    padded_batch = _round_up(batch, b_tile)
    if padded_batch != batch:
        x_in = jnp.zeros((padded_batch, width), x.dtype).at[:batch].set(x)
    else:
        x_in = x

    w1t = jnp.transpose(w1)                                  # (HIDDEN, FEAT) lane-dense

    out = pl.pallas_call(
        channel_attention_kernel,
        out_shape=jax.ShapeDtypeStruct((padded_batch, width), x.dtype),
        grid_spec=pltpu.PrefetchScalarGridSpec(
            num_scalar_prefetch=0,
            grid=(padded_batch // b_tile,),
            in_specs=[
                pl.BlockSpec((b_tile, width), lambda b: (b, 0)),
                pl.BlockSpec((HIDDEN, FEAT), lambda b: (0, 0)),
                pl.BlockSpec((1, HIDDEN), lambda b: (0, 0)),
                pl.BlockSpec((HIDDEN, FEAT), lambda b: (0, 0)),
                pl.BlockSpec((1, FEAT), lambda b: (0, 0)),
            ],
            out_specs=pl.BlockSpec((b_tile, width), lambda b: (b, 0)),
        ),
        compiler_params=pltpu.CompilerParams(
            dimension_semantics=("parallel",),
        ),
    )(x_in, w1t, b1, w2, b2)

    return out[:batch]


def reference(x, w1, b1, w2, b2, num_groups=NUM_GROUPS):
    batch = x.shape[0]
    xg = x.reshape(batch, num_groups, FEAT)
    gap = xg.mean(axis=1)
    h = jnp.maximum(gap @ w1 + b1, 0.0)
    w = jax.nn.sigmoid(h @ w2 + b2)
    return (xg * w[:, None, :]).reshape(batch, -1)


if __name__ == "__main__":
    key = jax.random.PRNGKey(0)
    k_x, k_w1, k_b1, k_w2, k_b2, k_x2 = jax.random.split(key, 6)

    # Deterministic init mimicking torch.nn.Linear (uniform +/- 1/sqrt(fan_in)).
    bound1 = 1.0 / jnp.sqrt(FEAT)
    w1 = jax.random.uniform(k_w1, (FEAT, HIDDEN), jnp.float32, -bound1, bound1)
    b1 = jax.random.uniform(k_b1, (1, HIDDEN), jnp.float32, -bound1, bound1)
    bound2 = 1.0 / jnp.sqrt(HIDDEN)
    w2 = jax.random.uniform(k_w2, (HIDDEN, FEAT), jnp.float32, -bound2, bound2)
    b2 = jax.random.uniform(k_b2, (1, FEAT), jnp.float32, -bound2, bound2)

    # Small primary case (batch=2 -> exercises batch padding to the tile).
    batch = 2
    x = jax.random.normal(k_x, (batch, NUM_GROUPS * FEAT), dtype=jnp.float32)
    out = jax.block_until_ready(channel_attention(x, w1, b1, w2, b2))
    ref = reference(x, w1, b1[0], w2, b2[0])
    assert out.shape == (batch, NUM_GROUPS * FEAT)
    assert jnp.allclose(out, ref, atol=1e-5, rtol=1e-5)

    # Non-multiple-of-8 batch to check pad/slice path.
    batch2 = 37
    x2 = jax.random.normal(k_x2, (batch2, NUM_GROUPS * FEAT), dtype=jnp.float32)
    out2 = jax.block_until_ready(channel_attention(x2, w1, b1, w2, b2))
    ref2 = reference(x2, w1, b1[0], w2, b2[0])
    assert out2.shape == (batch2, NUM_GROUPS * FEAT)
    assert jnp.allclose(out2, ref2, atol=1e-5, rtol=1e-5)

    print("KERNEL_OK")
</pallas_src>

<mosaic_0001>
module attributes {stable_mosaic.version = 11 : i64} {
  func.func @channel_attention_kernel(%arg0: i32, %arg1: memref<8x512xf32, #tpu.memory_space<vmem>>, %arg2: memref<8x128xf32, #tpu.memory_space<vmem>>, %arg3: memref<1x8xf32, #tpu.memory_space<vmem>>, %arg4: memref<8x128xf32, #tpu.memory_space<vmem>>, %arg5: memref<1x128xf32, #tpu.memory_space<vmem>>, %arg6: memref<8x512xf32, #tpu.memory_space<vmem>>) attributes {dimension_semantics = [#tpu.dimension_semantics<parallel>], iteration_bounds = array<i64: 1>, scalar_prefetch = 0 : i64, scratch_operands = 0 : i64, tpu.core_type = #tpu.core_type<tc>, window_params = [{transform_indices = @transform_0, window_bounds = array<i64: 8, 512>}, {pipeline_mode = #tpu.pipeline_mode<synchronous>, transform_indices = @transform_1, window_bounds = array<i64: 8, 128>}, {pipeline_mode = #tpu.pipeline_mode<synchronous>, transform_indices = @transform_2, window_bounds = array<i64: 1, 8>}, {pipeline_mode = #tpu.pipeline_mode<synchronous>, transform_indices = @transform_3, window_bounds = array<i64: 8, 128>}, {pipeline_mode = #tpu.pipeline_mode<synchronous>, transform_indices = @transform_4, window_bounds = array<i64: 1, 128>}, {transform_indices = @transform_5, window_bounds = array<i64: 8, 512>}]} {
    %c0 = arith.constant 0 : index
    %c0_0 = arith.constant 0 : index
    %0 = vector.load %arg1[%c0, %c0_0] : memref<8x512xf32, #tpu.memory_space<vmem>>, vector<8x512xf32>
    %1 = vector.extract_strided_slice %0 {offsets = [0, 0], sizes = [8, 128], strides = [1, 1]} : vector<8x512xf32> to vector<8x128xf32>
    %2 = vector.extract_strided_slice %0 {offsets = [0, 128], sizes = [8, 128], strides = [1, 1]} : vector<8x512xf32> to vector<8x128xf32>
    %3 = arith.addf %1, %2 : vector<8x128xf32>
    %4 = vector.extract_strided_slice %0 {offsets = [0, 256], sizes = [8, 128], strides = [1, 1]} : vector<8x512xf32> to vector<8x128xf32>
    %5 = arith.addf %3, %4 : vector<8x128xf32>
    %6 = vector.extract_strided_slice %0 {offsets = [0, 384], sizes = [8, 128], strides = [1, 1]} : vector<8x512xf32> to vector<8x128xf32>
    %7 = arith.addf %5, %6 : vector<8x128xf32>
    %cst = arith.constant 2.500000e-01 : f32
    %8 = vector.broadcast %cst : f32 to vector<8x128xf32>
    %9 = arith.mulf %7, %8 : vector<8x128xf32>
    %c0_1 = arith.constant 0 : index
    %c0_2 = arith.constant 0 : index
    %10 = vector.load %arg2[%c0_1, %c0_2] : memref<8x128xf32, #tpu.memory_space<vmem>>, vector<8x128xf32>
    %cst_3 = arith.constant dense<0.000000e+00> : vector<8x8xf32>
    %11 = tpu.matmul %9, %10, %cst_3 {dimension_numbers = #tpu.dot_dimension_numbers<[1], [1], [0], [0], [0, 0, 1, 0], [], []>} : vector<8x128xf32>, vector<8x128xf32>, vector<8x8xf32> -> vector<8x8xf32>
    %c0_4 = arith.constant 0 : index
    %c0_5 = arith.constant 0 : index
    %12 = vector.load %arg3[%c0_4, %c0_5] : memref<1x8xf32, #tpu.memory_space<vmem>>, vector<1x8xf32>
    %13 = vector.broadcast %12 : vector<1x8xf32> to vector<8x8xf32>
    %14 = arith.addf %11, %13 : vector<8x8xf32>
    %cst_6 = arith.constant 0.000000e+00 : f32
    %15 = vector.broadcast %cst_6 : f32 to vector<8x8xf32>
    %16 = arith.maximumf %14, %15 : vector<8x8xf32>
    %c0_7 = arith.constant 0 : index
    %c0_8 = arith.constant 0 : index
    %17 = vector.load %arg4[%c0_7, %c0_8] : memref<8x128xf32, #tpu.memory_space<vmem>>, vector<8x128xf32>
    %cst_9 = arith.constant dense<0.000000e+00> : vector<8x128xf32>
    %18 = tpu.matmul %16, %17, %cst_9 {dimension_numbers = #tpu.dot_dimension_numbers<[1], [0], [0], [1], [0, 0, 1, 1], [], []>} : vector<8x8xf32>, vector<8x128xf32>, vector<8x128xf32> -> vector<8x128xf32>
    %c0_10 = arith.constant 0 : index
    %c0_11 = arith.constant 0 : index
    %19 = vector.load %arg5[%c0_10, %c0_11] : memref<1x128xf32, #tpu.memory_space<vmem>>, vector<1x128xf32>
    %20 = vector.broadcast %19 : vector<1x128xf32> to vector<8x128xf32>
    %21 = arith.addf %18, %20 : vector<8x128xf32>
    %22 = arith.negf %21 : vector<8x128xf32>
    %23 = math.exp %22 : vector<8x128xf32>
    %cst_12 = arith.constant 1.000000e+00 : f32
    %24 = vector.broadcast %cst_12 : f32 to vector<8x128xf32>
    %25 = arith.addf %24, %23 : vector<8x128xf32>
    %26 = arith.divf %24, %25 : vector<8x128xf32>
    %27 = vector.extract_strided_slice %0 {offsets = [0, 0], sizes = [8, 128], strides = [1, 1]} : vector<8x512xf32> to vector<8x128xf32>
    %28 = arith.mulf %27, %26 : vector<8x128xf32>
    %c0_13 = arith.constant 0 : index
    %c0_14 = arith.constant 0 : index
    %29 = vector.load %arg6[%c0_13, %c0_14] : memref<8x512xf32, #tpu.memory_space<vmem>>, vector<8x128xf32>
    tpu.vector_store %arg6[%c0_13, %c0_14], %28 {strides = array<i32>} : memref<8x512xf32, #tpu.memory_space<vmem>>, vector<8x128xf32>,
    %30 = vector.extract_strided_slice %0 {offsets = [0, 128], sizes = [8, 128], strides = [1, 1]} : vector<8x512xf32> to vector<8x128xf32>
    %31 = arith.mulf %30, %26 : vector<8x128xf32>
    %c0_15 = arith.constant 0 : index
    %c128 = arith.constant 128 : index
    %32 = vector.load %arg6[%c0_15, %c128] : memref<8x512xf32, #tpu.memory_space<vmem>>, vector<8x128xf32>
    tpu.vector_store %arg6[%c0_15, %c128], %31 {strides = array<i32>} : memref<8x512xf32, #tpu.memory_space<vmem>>, vector<8x128xf32>,
    %33 = vector.extract_strided_slice %0 {offsets = [0, 256], sizes = [8, 128], strides = [1, 1]} : vector<8x512xf32> to vector<8x128xf32>
    %34 = arith.mulf %33, %26 : vector<8x128xf32>
    %c0_16 = arith.constant 0 : index
    %c256 = arith.constant 256 : index
    %35 = vector.load %arg6[%c0_16, %c256] : memref<8x512xf32, #tpu.memory_space<vmem>>, vector<8x128xf32>
    tpu.vector_store %arg6[%c0_16, %c256], %34 {strides = array<i32>} : memref<8x512xf32, #tpu.memory_space<vmem>>, vector<8x128xf32>,
    %36 = vector.extract_strided_slice %0 {offsets = [0, 384], sizes = [8, 128], strides = [1, 1]} : vector<8x512xf32> to vector<8x128xf32>
    %37 = arith.mulf %36, %26 : vector<8x128xf32>
    %c0_17 = arith.constant 0 : index
    %c384 = arith.constant 384 : index
    %38 = vector.load %arg6[%c0_17, %c384] : memref<8x512xf32, #tpu.memory_space<vmem>>, vector<8x128xf32>
    tpu.vector_store %arg6[%c0_17, %c384], %37 {strides = array<i32>} : memref<8x512xf32, #tpu.memory_space<vmem>>, vector<8x128xf32>,
    return
  }
  func.func @transform_0(%arg0: i32) -> (i32, i32) {
    %c0_i32 = arith.constant 0 : i32
    %c0_i32_0 = arith.constant 0 : i32
    return %arg0, %c0_i32 : i32, i32
  }
  func.func @transform_1(%arg0: i32) -> (i32, i32) {
    %c0_i32 = arith.constant 0 : i32
    %c0_i32_0 = arith.constant 0 : i32
    %c0_i32_1 = arith.constant 0 : i32
    return %c0_i32, %c0_i32_0 : i32, i32
  }
  func.func @transform_2(%arg0: i32) -> (i32, i32) {
    %c0_i32 = arith.constant 0 : i32
    %c0_i32_0 = arith.constant 0 : i32
    %c0_i32_1 = arith.constant 0 : i32
    return %c0_i32, %c0_i32_0 : i32, i32
  }
  func.func @transform_3(%arg0: i32) -> (i32, i32) {
    %c0_i32 = arith.constant 0 : i32
    %c0_i32_0 = arith.constant 0 : i32
    %c0_i32_1 = arith.constant 0 : i32
    return %c0_i32, %c0_i32_0 : i32, i32
  }
  func.func @transform_4(%arg0: i32) -> (i32, i32) {
    %c0_i32 = arith.constant 0 : i32
    %c0_i32_0 = arith.constant 0 : i32
    %c0_i32_1 = arith.constant 0 : i32
    return %c0_i32, %c0_i32_0 : i32, i32
  }
  func.func @transform_5(%arg0: i32) -> (i32, i32) {
    %c0_i32 = arith.constant 0 : i32
    %c0_i32_0 = arith.constant 0 : i32
    return %arg0, %c0_i32 : i32, i32
  }
}

</mosaic_0001>

<llo_original>
// kernel: tpu_custom_call.1
$region0: #{tpu_custom_call.1}
  #allocation0 [shape = 'u32[]', space=smem, size = 0x4, offset = 0x4, fixed_abs, tag = 'smem constant byte address 0x4 - core index']
  #allocation1 [shape = 'u32[144,128]{1,0:T(1,128)}', space=vmem, size = 0x12000, scoped, tag = 'internal scratch']
  %s0 = inlined_call_operand.hbm [shape: f32[8,512], index: 0, kind: input, shape index: {}]
  %s1 = inlined_call_operand.hbm [shape: f32[8,128], index: 1, kind: input, shape index: {}]
  %s2 = inlined_call_operand.vmem [shape: f32[1,8], index: 2, kind: input, shape index: {}]
  %s3 = inlined_call_operand.vmem [shape: f32[8,128], index: 3, kind: input, shape index: {}]
  %s4 = inlined_call_operand.vmem [shape: f32[1,128], index: 4, kind: input, shape index: {}]
  %s5 = inlined_call_operand.hbm [shape: f32[8,512], index: 5, kind: output, shape index: {}]
  %s6 = sld [smem:[#allocation0]]
  $region38: #{tpu_custom_call.1} parent=0
    _
  %s8 = ssub.s32 1, %s6
  %s9 = scalar_select 0, %s8, %s6
  $region1: #{tpu_custom_call.1} parent=0
    #allocation2 [shape = 'u8[16384]{0}', space=vmem, size = 0x4000, scoped, tag = 'input window, operand 0, single buffered']
    #allocation3 [shape = 's32[1]{0}', space=sflag, size = 0x4, scoped, tag = 'scoped memory for tpu_custom_call.1']
    #allocation4 [shape = 's32[1]{0}', space=sflag, size = 0x4, scoped, tag = 'scoped memory for tpu_custom_call.1']
    #allocation5 [shape = 'u8[4096]{0}', space=vmem, size = 0x1000, scoped, tag = 'input window, operand 1, single buffered']
    #allocation6 [shape = 's32[1]{0}', space=sflag, size = 0x4, scoped, tag = 'scoped memory for tpu_custom_call.1']
    #allocation7 [shape = 'u8[16384]{0}', space=vmem, size = 0x4000, scoped, tag = 'output window, operand 0, single buffered']
    %10 = vsyncpa [#allocation3], 0
    %11 = vsyncpa [#allocation6], 0
    %12 = vsyncpa [#allocation4], 0
    // Predicated region
    $region2: #{tpu_custom_call.1} parent=1 // pred_check
      _
    $region3: #{tpu_custom_call.1} parent=1 // pred_check_branch
      %14 = sbr.rel (0) target = $region5
    $region4: #{tpu_custom_call.1} parent=1 // pred_region
      %s16 = ssub.s32 512, 512
      %17 = vsyncadd [#allocation3], %s16
      %s19 = sshll.u32 [#allocation2], 4
      %s20 = int_to_ptr.vmem [resolvable:$true] %s19
      %22 = dma.hbm_to_vmem [thread:$0]  %s0, 512, %s20, [#allocation3]
    $region5: #{tpu_custom_call.1} parent=1 // pred_fallthru
      _
    // Predicated region
    $region6: #{tpu_custom_call.1} parent=1 // pred_check
      _
    $region7: #{tpu_custom_call.1} parent=1 // pred_check_branch
      %24 = sbr.rel (0) target = $region9
    $region8: #{tpu_custom_call.1} parent=1 // pred_region
      %s26 = ssub.s32 128, 128
      %27 = vsyncadd [#allocation6], %s26
      %s29 = sshll.u32 [#allocation5], 4
      %s30 = int_to_ptr.vmem [resolvable:$true] %s29
      %32 = dma.hbm_to_vmem [thread:$0]  %s1, 128, %s30, [#allocation6]
    $region9: #{tpu_custom_call.1} parent=1 // pred_fallthru
      _
    // Predicated region
    $region10: #{tpu_custom_call.1} parent=1 // pred_check
      _
    $region11: #{tpu_custom_call.1} parent=1 // pred_check_branch
      %34 = sbr.rel (0) target = $region13
    $region12: #{tpu_custom_call.1} parent=1 // pred_region
      _
    $region13: #{tpu_custom_call.1} parent=1 // pred_fallthru
      _
    // Predicated region
    $region14: #{tpu_custom_call.1} parent=1 // pred_check
      _
    $region15: #{tpu_custom_call.1} parent=1 // pred_check_branch
      %36 = sbr.rel (0) target = $region17
    $region16: #{tpu_custom_call.1} parent=1 // pred_region
      _
    $region17: #{tpu_custom_call.1} parent=1 // pred_fallthru
      _
    // Predicated region
    $region18: #{tpu_custom_call.1} parent=1 // pred_check
      _
    $region19: #{tpu_custom_call.1} parent=1 // pred_check_branch
      %38 = sbr.rel (0) target = $region21
    $region20: #{tpu_custom_call.1} parent=1 // pred_region
      _
    $region21: #{tpu_custom_call.1} parent=1 // pred_fallthru
      _
    // Predicated region
    $region22: #{tpu_custom_call.1} parent=1 // pred_check
      _
    $region23: #{tpu_custom_call.1} parent=1 // pred_check_branch
      %40 = sbr.rel (0) target = $region25
    $region24: #{tpu_custom_call.1} parent=1 // pred_region
      %41 = dma.done [#allocation3], 512
    $region25: #{tpu_custom_call.1} parent=1 // pred_fallthru
      _
    // Predicated region
    $region26: #{tpu_custom_call.1} parent=1 // pred_check
      _
    $region27: #{tpu_custom_call.1} parent=1 // pred_check_branch
      %43 = sbr.rel (0) target = $region29
    $region28: #{tpu_custom_call.1} parent=1 // pred_region
      %44 = dma.done [#allocation6], 128
    $region29: #{tpu_custom_call.1} parent=1 // pred_fallthru
      _
    %v45 = vld [vmem:[#allocation2] sm:$0xff]
    %v46 = vld [vmem:[#allocation2 + $0x8] sm:$0xff]
    %v47 = vld [vmem:[#allocation2 + $0x10] sm:$0xff]
    %v48 = vld [vmem:[#allocation2 + $0x18] sm:$0xff]
    %v49 = vadd.f32 %v45, %v46
    %v50 = vadd.f32 %v49, %v47
    %v51 = vadd.f32 %v50, %v48
    %v52 = vmul.f32 %v51, 0.25
    %v53 = vld [vmem:[#allocation5] sm:$0xff]
    %v54 = vld [vmem:[%s2] sm:$0x1]
    %v56 = vlaneseq
    %v57 = vshrl.u32 %v56, 7
    %v58 = vsub.s32 0, %v57
    %v59 = vrot.slane %v54, %v58
    %61 = vmatprep.subr.mxu0 0.0
    %62 = vmatpush1.xpose.msra.mxu0 %v53
    %63 = vmatprep.subr.mxu0 0.0
    %64 = vmatpush1.xpose.msra.mxu0 0.0
    %65 = vmatprep.subr.mxu0 0.0
    %66 = vmatpush1.xpose.msra.mxu0 0.0
    %67 = vmatprep.subr.mxu0 0.0
    %68 = vmatpush1.xpose.msra.mxu0 0.0
    %69 = vmatprep.subr.mxu0 0.0
    %70 = vmatpush1.xpose.msra.mxu0 0.0
    %71 = vmatprep.subr.mxu0 0.0
    %72 = vmatpush1.xpose.msra.mxu0 0.0
    %73 = vmatprep.subr.mxu0 0.0
    %74 = vmatpush1.xpose.msra.mxu0 0.0
    %75 = vmatprep.subr.mxu0 0.0
    %76 = vmatpush1.xpose.msra.mxu0 0.0
    %77 = vmatprep.subr.mxu0 0.0
    %78 = vmatpush1.xpose.msra.mxu0 0.0
    %79 = vmatprep.subr.mxu0 0.0
    %80 = vmatpush1.xpose.msra.mxu0 0.0
    %81 = vmatprep.subr.mxu0 0.0
    %82 = vmatpush1.xpose.msra.mxu0 0.0
    %83 = vmatprep.subr.mxu0 0.0
    %84 = vmatpush1.xpose.msra.mxu0 0.0
    %85 = vmatprep.subr.mxu0 0.0
    %86 = vmatpush1.xpose.msra.mxu0 0.0
    %87 = vmatprep.subr.mxu0 0.0
    %88 = vmatpush1.xpose.msra.mxu0 0.0
    %89 = vmatprep.subr.mxu0 0.0
    %90 = vmatpush1.xpose.msra.mxu0 0.0
    %91 = vmatprep.subr.mxu0 0.0
    %92 = vmatpush1.xpose.msra.mxu0 0.0
    %93 = vmatprep.subr.mxu0 0.0
    %94 = vmatpush1.xpose.msra.mxu0 0.0
    %95 = vmatprep.subr.mxu0 0.0
    %96 = vmatpush1.xpose.msra.mxu0 0.0
    %97 = vmatprep.subr.mxu0 0.0
    %98 = vmatpush1.xpose.msra.mxu0 0.0
    %99 = vmatprep.subr.mxu0 0.0
    %100 = vmatpush1.xpose.msra.mxu0 0.0
    %101 = vmatprep.subr.mxu0 0.0
    %102 = vmatpush1.xpose.msra.mxu0 0.0
    %103 = vmatprep.subr.mxu0 0.0
    %104 = vmatpush1.xpose.msra.mxu0 0.0
    %105 = vmatprep.subr.mxu0 0.0
    %106 = vmatpush1.xpose.msra.mxu0 0.0
    %107 = vmatprep.subr.mxu0 0.0
    %108 = vmatpush1.xpose.msra.mxu0 0.0
    %109 = vmatprep.subr.mxu0 0.0
    %110 = vmatpush1.xpose.msra.mxu0 0.0
    %111 = vmatprep.subr.mxu0 0.0
    %112 = vmatpush1.xpose.msra.mxu0 0.0
    %113 = vmatprep.subr.mxu0 0.0
    %114 = vmatpush1.xpose.msra.mxu0 0.0
    %115 = vmatprep.subr.mxu0 0.0
    %116 = vmatpush1.xpose.msra.mxu0 0.0
    %117 = vmatprep.subr.mxu0 0.0
    %118 = vmatpush1.xpose.msra.mxu0 0.0
    %119 = vmatprep.subr.mxu0 0.0
    %120 = vmatpush1.xpose.msra.mxu0 0.0
    %121 = vmatprep.subr.mxu0 0.0
    %122 = vmatpush1.xpose.msra.mxu0 0.0
    %123 = vmatprep.subr.mxu0 0.0
    %124 = vmatpush1.xpose.msra.mxu0 0.0
    %125 = vmatprep.mubr.f32.mxu0 0.0
    %126 = vmatmul.mubr.f32.gmra.mrb[0].mxu0 %v52
    %v127 = vpop.f32.mrb[0].mxu0
    %v128 = vadd.f32 %v59, %v127
    %v129 = vpop.f32.mrb[0].mxu0
    %130 = vdwg.mxu0
    %v131 = vmax.f32 %v128, 0.0
    %v132 = vld [vmem:[%s3] sm:$0xff]
    %v133 = vld [vmem:[%s4] sm:$0x1]
    %v135 = vlaneseq
    %v136 = vshrl.u32 %v135, 7
    %v137 = vsub.s32 0, %v136
    %v138 = vrot.slane %v133, %v137
    %vm140 = vcmask 64512
    %v142 = vsel %vm140, %v131, 0
    %144 = vmatprep.subr.mxu0 0.0
    %145 = vmatpush1.msra.mxu0 %v132
    %146 = vmatprep.subr.mxu0 0.0
    %147 = vmatpush1.msra.mxu0 0.0
    %148 = vmatprep.subr.mxu0 0.0
    %149 = vmatpush1.msra.mxu0 0.0
    %150 = vmatprep.subr.mxu0 0.0
    %151 = vmatpush1.msra.mxu0 0.0
    %152 = vmatprep.subr.mxu0 0.0
    %153 = vmatpush1.msra.mxu0 0.0
    %154 = vmatprep.subr.mxu0 0.0
    %155 = vmatpush1.msra.mxu0 0.0
    %156 = vmatprep.subr.mxu0 0.0
    %157 = vmatpush1.msra.mxu0 0.0
    %158 = vmatprep.subr.mxu0 0.0
    %159 = vmatpush1.msra.mxu0 0.0
    %160 = vmatprep.subr.mxu0 0.0
    %161 = vmatpush1.msra.mxu0 0.0
    %162 = vmatprep.subr.mxu0 0.0
    %163 = vmatpush1.msra.mxu0 0.0
    %164 = vmatprep.subr.mxu0 0.0
    %165 = vmatpush1.msra.mxu0 0.0
    %166 = vmatprep.subr.mxu0 0.0
    %167 = vmatpush1.msra.mxu0 0.0
    %168 = vmatprep.subr.mxu0 0.0
    %169 = vmatpush1.msra.mxu0 0.0
    %170 = vmatprep.subr.mxu0 0.0
    %171 = vmatpush1.msra.mxu0 0.0
    %172 = vmatprep.subr.mxu0 0.0
    %173 = vmatpush1.msra.mxu0 0.0
    %174 = vmatprep.subr.mxu0 0.0
    %175 = vmatpush1.msra.mxu0 0.0
    %176 = vmatprep.subr.mxu0 0.0
    %177 = vmatpush1.msra.mxu0 0.0
    %178 = vmatprep.subr.mxu0 0.0
    %179 = vmatpush1.msra.mxu0 0.0
    %180 = vmatprep.subr.mxu0 0.0
    %181 = vmatpush1.msra.mxu0 0.0
    %182 = vmatprep.subr.mxu0 0.0
    %183 = vmatpush1.msra.mxu0 0.0
    %184 = vmatprep.subr.mxu0 0.0
    %185 = vmatpush1.msra.mxu0 0.0
    %186 = vmatprep.subr.mxu0 0.0
    %187 = vmatpush1.msra.mxu0 0.0
    %188 = vmatprep.subr.mxu0 0.0
    %189 = vmatpush1.msra.mxu0 0.0
    %190 = vmatprep.subr.mxu0 0.0
    %191 = vmatpush1.msra.mxu0 0.0
    %192 = vmatprep.subr.mxu0 0.0
    %193 = vmatpush1.msra.mxu0 0.0
    %194 = vmatprep.subr.mxu0 0.0
    %195 = vmatpush1.msra.mxu0 0.0
    %196 = vmatprep.subr.mxu0 0.0
    %197 = vmatpush1.msra.mxu0 0.0
    %198 = vmatprep.subr.mxu0 0.0
    %199 = vmatpush1.msra.mxu0 0.0
    %200 = vmatprep.subr.mxu0 0.0
    %201 = vmatpush1.msra.mxu0 0.0
    %202 = vmatprep.subr.mxu0 0.0
    %203 = vmatpush1.msra.mxu0 0.0
    %204 = vmatprep.subr.mxu0 0.0
    %205 = vmatpush1.msra.mxu0 0.0
    %206 = vmatprep.subr.mxu0 0.0
    %207 = vmatpush1.msra.mxu0 0.0
    %208 = vmatprep.mubr.f32.mxu0 0.0
    %209 = vmatmul.mubr.f32.gmra.mrb[0].mxu0 %v142
    %v210 = vpop.f32.mrb[0].mxu0
    %v211 = vadd.f32 %v138, %v210
    %v212 = vpop.f32.mrb[0].mxu0
    %213 = vdwg.mxu0
    %v214 = vxor.u32 %v211, 2147483648
    %v215 = vmul.f32 %v214, 1.442695
    %v216 = vpow.pop %v215
    %v217 = vadd.f32 %v216, 1.0
    %v218 = vrcp.pop %v217
    %v219 = vmul.f32 1.0, %v218
    %v220 = vmul.f32 %v45, %v219
    %221 = vst [vmem:[#allocation7] sm:$0xff] %v220
    %v222 = vmul.f32 %v46, %v219
    %223 = vst [vmem:[#allocation7 + $0x8] sm:$0xff] %v222
    %v224 = vmul.f32 %v47, %v219
    %225 = vst [vmem:[#allocation7 + $0x10] sm:$0xff] %v224
    %v226 = vmul.f32 %v48, %v219
    %227 = vst [vmem:[#allocation7 + $0x18] sm:$0xff] %v226
    // Predicated region
    $region30: #{tpu_custom_call.1} parent=1 // pred_check
      _
    $region31: #{tpu_custom_call.1} parent=1 // pred_check_branch
      %229 = sbr.rel (0) target = $region33
    $region32: #{tpu_custom_call.1} parent=1 // pred_region
      %s231 = ssub.s32 512, 512
      %232 = vsyncadd [#allocation4], %s231
      %s234 = sshll.u32 [#allocation7], 4
      %s235 = int_to_ptr.vmem [resolvable:$true] %s234
      %237 = dma.vmem_to_hbm [thread:$0]  %s235, 512, %s5, [#allocation4]
    $region33: #{tpu_custom_call.1} parent=1 // pred_fallthru
      _
    // Predicated region
    $region34: #{tpu_custom_call.1} parent=1 // pred_check
      _
    $region35: #{tpu_custom_call.1} parent=1 // pred_check_branch
      %239 = sbr.rel (0) target = $region37
    $region36: #{tpu_custom_call.1} parent=1 // pred_region
      %240 = dma.done [#allocation4], 512
    $region37: #{tpu_custom_call.1} parent=1 // pred_fallthru
      _
    %241 = vsyncpa [#allocation3], 1
    %242 = vsyncpa [#allocation6], 1
    %243 = vsyncpa [#allocation4], 1

</llo_original>
